<compile_context>
chip_gen: v6e
topology: v6e:2x2x1
jax: 0.10.0
libtpu: 0.0.40
codegen_flags: <defaults>
</compile_context>

<pallas_src>
import math

import jax
import jax.numpy as jnp
from jax.experimental import pallas as pl
from jax.experimental.pallas import tpu as pltpu


def rope_kernel(x_ref, cos_ref, sin_ref, o_ref):
    """x_ref/o_ref: (TS, TR, D); cos_ref/sin_ref: (TS, 1, D//2) float32."""
    xv = x_ref[...]
    c = cos_ref[...]                      # (TS, 1, d2) -> broadcast over rows
    s = sin_ref[...]
    d2 = c.shape[-1]

    x1 = xv[..., :d2].astype(jnp.float32)
    x2 = xv[..., d2:].astype(jnp.float32)

    # out[..., :d2] = x[:d2]*cos - x[d2:]*sin
    # out[..., d2:] = x[d2:]*cos + x[:d2]*sin
    o1 = x1 * c - x2 * s
    o2 = x2 * c + x1 * s
    o_ref[...] = jnp.concatenate([o1, o2], axis=-1).astype(o_ref.dtype)


def _choose_tiles(S, R, D, itemsize, target_block_bytes):
    """Pick (tile_s, tile_r) so one x block is ~target_block_bytes."""
    row_bytes = D * itemsize
    if R * row_bytes <= target_block_bytes:
        tile_r = R                                    # full dim -> always legal
    else:
        tile_r = max(8, (target_block_bytes // row_bytes) // 8 * 8)  # mult of 8
        tile_r = min(tile_r, R)
    tile_s = max(1, target_block_bytes // (tile_r * row_bytes))
    tile_s = min(tile_s, S)
    return int(tile_s), int(tile_r)


def rope_pallas(x: jax.Array, base: int,
                *, target_block_bytes: int = 2 * 1024 * 1024) -> jax.Array:
    """x: [seq, batch, heads, d] -> same shape/dtype."""
    S, B, H, D = x.shape
    assert D % 2 == 0, "d must be even for RoPE"
    d2 = D // 2
    R = B * H
    itemsize = jnp.dtype(x.dtype).itemsize

    # (S, B, H, D) -> (S, B*H, D): contiguous reshape, no data movement.
    xr = x.reshape(S, R, D)

    # Precompute the (shared-across-batch/heads) half tables in f32.
    theta = 1.0 / (float(base) ** (jnp.arange(0, D, 2, dtype=jnp.float32) / D))  # (d2,)
    pos = jnp.arange(S, dtype=jnp.float32)
    ang = pos[:, None] * theta[None, :]                                          # (S, d2)
    cos_t = jnp.cos(ang)[:, None, :]                                             # (S, 1, d2)
    sin_t = jnp.sin(ang)[:, None, :]

    tile_s, tile_r = _choose_tiles(S, R, D, itemsize, target_block_bytes)
    grid = (pl.cdiv(S, tile_s), pl.cdiv(R, tile_r))

    cost = pl.CostEstimate(
        flops=3 * S * R * D,
        transcendentals=0,
        bytes_accessed=2 * S * R * D * itemsize + 2 * S * d2 * 4,
    )

    out = pl.pallas_call(
        rope_kernel,
        out_shape=jax.ShapeDtypeStruct((S, R, D), x.dtype),
        grid_spec=pltpu.PrefetchScalarGridSpec(
            num_scalar_prefetch=0,
            grid=grid,
            in_specs=[
                pl.BlockSpec((tile_s, tile_r, D), lambda si, ri: (si, ri, 0)),
                pl.BlockSpec((tile_s, 1, d2), lambda si, ri: (si, 0, 0)),
                pl.BlockSpec((tile_s, 1, d2), lambda si, ri: (si, 0, 0)),
            ],
            out_specs=pl.BlockSpec((tile_s, tile_r, D), lambda si, ri: (si, ri, 0)),
        ),
        compiler_params=pltpu.CompilerParams(
            dimension_semantics=("parallel", "parallel"),
            vmem_limit_bytes=32 * 1024 * 1024,
        ),
        cost_estimate=cost,
    )(xr, cos_t, sin_t)

    return out.reshape(S, B, H, D)


def rope_reference(x: jax.Array, base: int) -> jax.Array:
    """Pure-JAX reference mirroring the PyTorch module."""
    S, B, H, D = x.shape
    d2 = D // 2
    theta = 1.0 / (base ** (jnp.arange(0, D, 2, dtype=jnp.float32) / D))
    seq_idx = jnp.arange(S, dtype=jnp.float32)
    idx_theta = jnp.einsum("i,j->ij", seq_idx, theta)
    idx_theta2 = jnp.concatenate([idx_theta, idx_theta], axis=1)
    cos_cache = jnp.cos(idx_theta2)[:, None, None, :]
    sin_cache = jnp.sin(idx_theta2)[:, None, None, :]
    neg_half = jnp.concatenate([-x[..., d2:], x[..., :d2]], axis=-1)
    return x * cos_cache + neg_half * sin_cache


if __name__ == "__main__":
    base = 10000
    key = jax.random.PRNGKey(0)

    # Test 1: small deterministic example (single tile).
    seq, batch, heads, d = 8, 2, 4, 32
    k1, k2 = jax.random.split(key)
    x = jax.random.normal(k1, (seq, batch, heads, d), dtype=jnp.float32)
    out = jax.block_until_ready(rope_pallas(x, base))
    ref = rope_reference(x, base)
    assert out.shape == ref.shape and out.dtype == ref.dtype
    assert jnp.allclose(out, ref, atol=1e-5, rtol=1e-5), "mismatch vs reference (test 1)"

    # Test 2: force a multi-tile seq grid (tiny target block) to exercise pipelining.
    seq2, batch2, heads2, d2_ = 64, 2, 4, 64
    x2 = jax.random.normal(k2, (seq2, batch2, heads2, d2_), dtype=jnp.float32)
    out2 = jax.block_until_ready(rope_pallas(x2, base, target_block_bytes=8192))
    ref2 = rope_reference(x2, base)
    assert jnp.allclose(out2, ref2, atol=1e-5, rtol=1e-5), "mismatch vs reference (test 2)"

    print("KERNEL_OK")
</pallas_src>

<mosaic_0001>
module attributes {stable_mosaic.version = 11 : i64} {
  func.func @rope_kernel(%arg0: i32, %arg1: i32, %arg2: memref<8x8x32xf32, #tpu.memory_space<vmem>>, %arg3: memref<8x1x16xf32, #tpu.memory_space<vmem>>, %arg4: memref<8x1x16xf32, #tpu.memory_space<vmem>>, %arg5: memref<8x8x32xf32, #tpu.memory_space<vmem>>) attributes {dimension_semantics = [#tpu.dimension_semantics<parallel>, #tpu.dimension_semantics<parallel>], iteration_bounds = array<i64: 1, 1>, scalar_prefetch = 0 : i64, scratch_operands = 0 : i64, tpu.core_type = #tpu.core_type<tc>, window_params = [{transform_indices = @transform_0, window_bounds = array<i64: 8, 8, 32>}, {transform_indices = @transform_1, window_bounds = array<i64: 8, 1, 16>}, {transform_indices = @transform_2, window_bounds = array<i64: 8, 1, 16>}, {transform_indices = @transform_3, window_bounds = array<i64: 8, 8, 32>}]} {
    %c0 = arith.constant 0 : index
    %c0_0 = arith.constant 0 : index
    %c0_1 = arith.constant 0 : index
    %0 = vector.load %arg2[%c0, %c0_0, %c0_1] : memref<8x8x32xf32, #tpu.memory_space<vmem>>, vector<8x8x32xf32>
    %c0_2 = arith.constant 0 : index
    %c0_3 = arith.constant 0 : index
    %c0_4 = arith.constant 0 : index
    %1 = vector.load %arg3[%c0_2, %c0_3, %c0_4] : memref<8x1x16xf32, #tpu.memory_space<vmem>>, vector<8x1x16xf32>
    %c0_5 = arith.constant 0 : index
    %c0_6 = arith.constant 0 : index
    %c0_7 = arith.constant 0 : index
    %2 = vector.load %arg4[%c0_5, %c0_6, %c0_7] : memref<8x1x16xf32, #tpu.memory_space<vmem>>, vector<8x1x16xf32>
    %3 = vector.extract_strided_slice %0 {offsets = [0, 0, 0], sizes = [8, 8, 16], strides = [1, 1, 1]} : vector<8x8x32xf32> to vector<8x8x16xf32>
    %4 = vector.extract_strided_slice %0 {offsets = [0, 0, 16], sizes = [8, 8, 16], strides = [1, 1, 1]} : vector<8x8x32xf32> to vector<8x8x16xf32>
    %5 = vector.broadcast %1 : vector<8x1x16xf32> to vector<8x8x16xf32>
    %6 = arith.mulf %3, %5 : vector<8x8x16xf32>
    %7 = vector.broadcast %2 : vector<8x1x16xf32> to vector<8x8x16xf32>
    %8 = arith.mulf %4, %7 : vector<8x8x16xf32>
    %9 = arith.subf %6, %8 : vector<8x8x16xf32>
    %10 = vector.broadcast %1 : vector<8x1x16xf32> to vector<8x8x16xf32>
    %11 = arith.mulf %4, %10 : vector<8x8x16xf32>
    %12 = vector.broadcast %2 : vector<8x1x16xf32> to vector<8x8x16xf32>
    %13 = arith.mulf %3, %12 : vector<8x8x16xf32>
    %14 = arith.addf %11, %13 : vector<8x8x16xf32>
    %15 = tpu.concatenate %9, %14 in 2 : vector<8x8x16xf32>, vector<8x8x16xf32> -> vector<8x8x32xf32>
    %c0_8 = arith.constant 0 : index
    %c0_9 = arith.constant 0 : index
    %c0_10 = arith.constant 0 : index
    %16 = vector.load %arg5[%c0_8, %c0_9, %c0_10] : memref<8x8x32xf32, #tpu.memory_space<vmem>>, vector<8x8x32xf32>
    tpu.vector_store %arg5[%c0_8, %c0_9, %c0_10], %15 {strides = array<i32>} : memref<8x8x32xf32, #tpu.memory_space<vmem>>, vector<8x8x32xf32>,
    return
  }
  func.func @transform_0(%arg0: i32, %arg1: i32) -> (i32, i32, i32) {
    %c0_i32 = arith.constant 0 : i32
    %c0_i32_0 = arith.constant 0 : i32
    return %arg0, %arg1, %c0_i32 : i32, i32, i32
  }
  func.func @transform_1(%arg0: i32, %arg1: i32) -> (i32, i32, i32) {
    %c0_i32 = arith.constant 0 : i32
    %c0_i32_0 = arith.constant 0 : i32
    %c0_i32_1 = arith.constant 0 : i32
    return %arg0, %c0_i32, %c0_i32_0 : i32, i32, i32
  }
  func.func @transform_2(%arg0: i32, %arg1: i32) -> (i32, i32, i32) {
    %c0_i32 = arith.constant 0 : i32
    %c0_i32_0 = arith.constant 0 : i32
    %c0_i32_1 = arith.constant 0 : i32
    return %arg0, %c0_i32, %c0_i32_0 : i32, i32, i32
  }
  func.func @transform_3(%arg0: i32, %arg1: i32) -> (i32, i32, i32) {
    %c0_i32 = arith.constant 0 : i32
    %c0_i32_0 = arith.constant 0 : i32
    return %arg0, %arg1, %c0_i32 : i32, i32, i32
  }
}

</mosaic_0001>

<llo_original>
// kernel: tpu_custom_call.1
$region0: #{tpu_custom_call.1}
  #allocation0 [shape = 'u32[]', space=smem, size = 0x4, offset = 0x4, fixed_abs, tag = 'smem constant byte address 0x4 - core index']
  #allocation1 [shape = 'u32[144,128]{1,0:T(1,128)}', space=vmem, size = 0x12000, scoped, tag = 'internal scratch']
  %s0 = inlined_call_operand.hbm [shape: f32[8,8,32], index: 0, kind: input, shape index: {}]
  %s1 = inlined_call_operand.hbm [shape: f32[8,1,16], index: 1, kind: input, shape index: {}]
  %s2 = inlined_call_operand.hbm [shape: f32[8,1,16], index: 2, kind: input, shape index: {}]
  %s3 = inlined_call_operand.hbm [shape: f32[8,8,32], index: 3, kind: output, shape index: {}]
  %s4 = sld [smem:[#allocation0]]
  $region34: #{tpu_custom_call.1} parent=0
    _
  %s6 = ssub.s32 1, %s4
  %s7 = scalar_select 0, %s6, %s4
  $region1: #{tpu_custom_call.1} parent=0
    #allocation2 [shape = 'u8[32768]{0}', space=vmem, size = 0x8000, scoped, tag = 'input window, operand 0, single buffered']
    #allocation3 [shape = 's32[1]{0}', space=sflag, size = 0x4, scoped, tag = 'scoped memory for tpu_custom_call.1']
    #allocation4 [shape = 's32[1]{0}', space=sflag, size = 0x4, scoped, tag = 'scoped memory for tpu_custom_call.1']
    #allocation5 [shape = 'u8[4096]{0}', space=vmem, size = 0x1000, scoped, tag = 'input window, operand 1, single buffered']
    #allocation6 [shape = 's32[1]{0}', space=sflag, size = 0x4, scoped, tag = 'scoped memory for tpu_custom_call.1']
    #allocation7 [shape = 'u8[4096]{0}', space=vmem, size = 0x1000, scoped, tag = 'input window, operand 2, single buffered']
    #allocation8 [shape = 'u8[32768]{0}', space=vmem, size = 0x8000, scoped, tag = 'output window, operand 0, single buffered']
    %8 = vsyncpa [#allocation3], 0
    %9 = vsyncpa [#allocation6], 0
    %10 = vsyncpa [#allocation4], 0
    // Predicated region
    $region2: #{tpu_custom_call.1} parent=1 // pred_check
      _
    $region3: #{tpu_custom_call.1} parent=1 // pred_check_branch
      %12 = sbr.rel (0) target = $region5
    $region4: #{tpu_custom_call.1} parent=1 // pred_region
      %s14 = ssub.s32 1024, 1024
      %15 = vsyncadd [#allocation3], %s14
      %s16 = sshll.u32 [#allocation2], 4
      %s17 = int_to_ptr.vmem [resolvable:$true] %s16
      %22 = dma.hbm_to_vmem [thread:$0]  %s0, 1024, %s17, [#allocation3], 128, 128, 8
    $region5: #{tpu_custom_call.1} parent=1 // pred_fallthru
      _
    // Predicated region
    $region6: #{tpu_custom_call.1} parent=1 // pred_check
      _
    $region7: #{tpu_custom_call.1} parent=1 // pred_check_branch
      %24 = sbr.rel (0) target = $region9
    $region8: #{tpu_custom_call.1} parent=1 // pred_region
      %s26 = ssub.s32 128, 128
      %27 = vsyncadd [#allocation6], %s26
      %s28 = sshll.u32 [#allocation5], 4
      %s29 = int_to_ptr.vmem [resolvable:$true] %s28
      %34 = dma.hbm_to_vmem [thread:$0]  %s1, 128, %s29, [#allocation6], 16, 16, 1
    $region9: #{tpu_custom_call.1} parent=1 // pred_fallthru
      _
    // Predicated region
    $region10: #{tpu_custom_call.1} parent=1 // pred_check
      _
    $region11: #{tpu_custom_call.1} parent=1 // pred_check_branch
      %36 = sbr.rel (0) target = $region13
    $region12: #{tpu_custom_call.1} parent=1 // pred_region
      %s38 = ssub.s32 128, 128
      %39 = vsyncadd [#allocation6], %s38
      %s40 = sshll.u32 [#allocation7], 4
      %s41 = int_to_ptr.vmem [resolvable:$true] %s40
      %46 = dma.hbm_to_vmem [thread:$0]  %s2, 128, %s41, [#allocation6], 16, 16, 1
    $region13: #{tpu_custom_call.1} parent=1 // pred_fallthru
      _
    // Predicated region
    $region14: #{tpu_custom_call.1} parent=1 // pred_check
      _
    $region15: #{tpu_custom_call.1} parent=1 // pred_check_branch
      %48 = sbr.rel (0) target = $region17
    $region16: #{tpu_custom_call.1} parent=1 // pred_region
      %49 = dma.done [#allocation3], 1024
    $region17: #{tpu_custom_call.1} parent=1 // pred_fallthru
      _
    // Predicated region
    $region18: #{tpu_custom_call.1} parent=1 // pred_check
      _
    $region19: #{tpu_custom_call.1} parent=1 // pred_check_branch
      %51 = sbr.rel (0) target = $region21
    $region20: #{tpu_custom_call.1} parent=1 // pred_region
      %52 = dma.done [#allocation6], 128
    $region21: #{tpu_custom_call.1} parent=1 // pred_fallthru
      _
    // Predicated region
    $region22: #{tpu_custom_call.1} parent=1 // pred_check
      _
    $region23: #{tpu_custom_call.1} parent=1 // pred_check_branch
      %54 = sbr.rel (0) target = $region25
    $region24: #{tpu_custom_call.1} parent=1 // pred_region
      %55 = dma.done [#allocation6], 128
    $region25: #{tpu_custom_call.1} parent=1 // pred_fallthru
      _
    %v56 = vld [vmem:[#allocation2] sm:$0xff]
    %v57 = vld [vmem:[#allocation2 + $0x8] sm:$0xff]
    %v58 = vld [vmem:[#allocation2 + $0x10] sm:$0xff]
    %v59 = vld [vmem:[#allocation2 + $0x18] sm:$0xff]
    %v60 = vld [vmem:[#allocation2 + $0x20] sm:$0xff]
    %v61 = vld [vmem:[#allocation2 + $0x28] sm:$0xff]
    %v62 = vld [vmem:[#allocation2 + $0x30] sm:$0xff]
    %v63 = vld [vmem:[#allocation2 + $0x38] sm:$0xff]
    %v64 = vld [vmem:[#allocation5] sm:$0x1]
    %v65 = vld [vmem:[#allocation5 + $0x1] sm:$0x1]
    %v66 = vld [vmem:[#allocation5 + $0x2] sm:$0x1]
    %v67 = vld [vmem:[#allocation5 + $0x3] sm:$0x1]
    %v68 = vld [vmem:[#allocation5 + $0x4] sm:$0x1]
    %v69 = vld [vmem:[#allocation5 + $0x5] sm:$0x1]
    %v70 = vld [vmem:[#allocation5 + $0x6] sm:$0x1]
    %v71 = vld [vmem:[#allocation5 + $0x7] sm:$0x1]
    %v72 = vld [vmem:[#allocation7] sm:$0x1]
    %v73 = vld [vmem:[#allocation7 + $0x1] sm:$0x1]
    %v74 = vld [vmem:[#allocation7 + $0x2] sm:$0x1]
    %v75 = vld [vmem:[#allocation7 + $0x3] sm:$0x1]
    %v76 = vld [vmem:[#allocation7 + $0x4] sm:$0x1]
    %v77 = vld [vmem:[#allocation7 + $0x5] sm:$0x1]
    %v78 = vld [vmem:[#allocation7 + $0x6] sm:$0x1]
    %v79 = vld [vmem:[#allocation7 + $0x7] sm:$0x1]
    %v88 = vlaneseq
    %v89 = vshrl.u32 %v88, 7
    %v90 = vsub.s32 0, %v89
    %v91 = vrot.slane %v64, %v90
    %v92 = vlaneseq
    %v93 = vshrl.u32 %v92, 7
    %v94 = vsub.s32 0, %v93
    %v95 = vrot.slane %v65, %v94
    %v96 = vlaneseq
    %v97 = vshrl.u32 %v96, 7
    %v98 = vsub.s32 0, %v97
    %v99 = vrot.slane %v66, %v98
    %v100 = vlaneseq
    %v101 = vshrl.u32 %v100, 7
    %v102 = vsub.s32 0, %v101
    %v103 = vrot.slane %v67, %v102
    %v104 = vlaneseq
    %v105 = vshrl.u32 %v104, 7
    %v106 = vsub.s32 0, %v105
    %v107 = vrot.slane %v68, %v106
    %v108 = vlaneseq
    %v109 = vshrl.u32 %v108, 7
    %v110 = vsub.s32 0, %v109
    %v111 = vrot.slane %v69, %v110
    %v112 = vlaneseq
    %v113 = vshrl.u32 %v112, 7
    %v114 = vsub.s32 0, %v113
    %v115 = vrot.slane %v70, %v114
    %v116 = vlaneseq
    %v117 = vshrl.u32 %v116, 7
    %v118 = vsub.s32 0, %v117
    %v119 = vrot.slane %v71, %v118
    %v128 = vmul.f32 %v56, %v91
    %v129 = vmul.f32 %v57, %v95
    %v130 = vmul.f32 %v58, %v99
    %v131 = vmul.f32 %v59, %v103
    %v132 = vmul.f32 %v60, %v107
    %v133 = vmul.f32 %v61, %v111
    %v134 = vmul.f32 %v62, %v115
    %v135 = vmul.f32 %v63, %v119
    %v144 = vlaneseq
    %v145 = vshrl.u32 %v144, 7
    %v146 = vsub.s32 0, %v145
    %v147 = vrot.slane %v72, %v146
    %v148 = vlaneseq
    %v149 = vshrl.u32 %v148, 7
    %v150 = vsub.s32 0, %v149
    %v151 = vrot.slane %v73, %v150
    %v152 = vlaneseq
    %v153 = vshrl.u32 %v152, 7
    %v154 = vsub.s32 0, %v153
    %v155 = vrot.slane %v74, %v154
    %v156 = vlaneseq
    %v157 = vshrl.u32 %v156, 7
    %v158 = vsub.s32 0, %v157
    %v159 = vrot.slane %v75, %v158
    %v160 = vlaneseq
    %v161 = vshrl.u32 %v160, 7
    %v162 = vsub.s32 0, %v161
    %v163 = vrot.slane %v76, %v162
    %v164 = vlaneseq
    %v165 = vshrl.u32 %v164, 7
    %v166 = vsub.s32 0, %v165
    %v167 = vrot.slane %v77, %v166
    %v168 = vlaneseq
    %v169 = vshrl.u32 %v168, 7
    %v170 = vsub.s32 0, %v169
    %v171 = vrot.slane %v78, %v170
    %v172 = vlaneseq
    %v173 = vshrl.u32 %v172, 7
    %v174 = vsub.s32 0, %v173
    %v175 = vrot.slane %v79, %v174
    %184 = vrot.lane.b32.xlu0 %v147, 16
    %v185 = vpop.permute.xlu0 %184
    %186 = vrot.lane.b32.xlu0 %v151, 16
    %v187 = vpop.permute.xlu0 %186
    %188 = vrot.lane.b32.xlu0 %v155, 16
    %v189 = vpop.permute.xlu0 %188
    %190 = vrot.lane.b32.xlu0 %v159, 16
    %v191 = vpop.permute.xlu0 %190
    %192 = vrot.lane.b32.xlu0 %v163, 16
    %v193 = vpop.permute.xlu0 %192
    %194 = vrot.lane.b32.xlu0 %v167, 16
    %v195 = vpop.permute.xlu0 %194
    %196 = vrot.lane.b32.xlu0 %v171, 16
    %v197 = vpop.permute.xlu0 %196
    %198 = vrot.lane.b32.xlu0 %v175, 16
    %v199 = vpop.permute.xlu0 %198
    %v208 = vmul.f32 %v56, %v185
    %v209 = vmul.f32 %v57, %v187
    %v210 = vmul.f32 %v58, %v189
    %v211 = vmul.f32 %v59, %v191
    %v212 = vmul.f32 %v60, %v193
    %v213 = vmul.f32 %v61, %v195
    %v214 = vmul.f32 %v62, %v197
    %v215 = vmul.f32 %v63, %v199
    %224 = vrot.lane.b32.xlu0 %v208, 112
    %v225 = vpop.permute.xlu0 %224
    %226 = vrot.lane.b32.xlu0 %v209, 112
    %v227 = vpop.permute.xlu0 %226
    %228 = vrot.lane.b32.xlu0 %v210, 112
    %v229 = vpop.permute.xlu0 %228
    %230 = vrot.lane.b32.xlu0 %v211, 112
    %v231 = vpop.permute.xlu0 %230
    %232 = vrot.lane.b32.xlu0 %v212, 112
    %v233 = vpop.permute.xlu0 %232
    %234 = vrot.lane.b32.xlu0 %v213, 112
    %v235 = vpop.permute.xlu0 %234
    %236 = vrot.lane.b32.xlu0 %v214, 112
    %v237 = vpop.permute.xlu0 %236
    %238 = vrot.lane.b32.xlu0 %v215, 112
    %v239 = vpop.permute.xlu0 %238
    %v248 = vsub.f32 %v128, %v225
    %v249 = vsub.f32 %v129, %v227
    %v250 = vsub.f32 %v130, %v229
    %v251 = vsub.f32 %v131, %v231
    %v252 = vsub.f32 %v132, %v233
    %v253 = vsub.f32 %v133, %v235
    %v254 = vsub.f32 %v134, %v237
    %v255 = vsub.f32 %v135, %v239
    %256 = vrot.lane.b32.xlu0 %v91, 16
    %v257 = vpop.permute.xlu0 %256
    %258 = vrot.lane.b32.xlu0 %v95, 16
    %v259 = vpop.permute.xlu0 %258
    %260 = vrot.lane.b32.xlu0 %v99, 16
    %v261 = vpop.permute.xlu0 %260
    %262 = vrot.lane.b32.xlu0 %v103, 16
    %v263 = vpop.permute.xlu0 %262
    %264 = vrot.lane.b32.xlu0 %v107, 16
    %v265 = vpop.permute.xlu0 %264
    %266 = vrot.lane.b32.xlu0 %v111, 16
    %v267 = vpop.permute.xlu0 %266
    %268 = vrot.lane.b32.xlu0 %v115, 16
    %v269 = vpop.permute.xlu0 %268
    %270 = vrot.lane.b32.xlu0 %v119, 16
    %v271 = vpop.permute.xlu0 %270
    %v280 = vmul.f32 %v56, %v257
    %v281 = vmul.f32 %v57, %v259
    %v282 = vmul.f32 %v58, %v261
    %v283 = vmul.f32 %v59, %v263
    %v284 = vmul.f32 %v60, %v265
    %v285 = vmul.f32 %v61, %v267
    %v286 = vmul.f32 %v62, %v269
    %v287 = vmul.f32 %v63, %v271
    %v288 = vmul.f32 %v56, %v147
    %v289 = vmul.f32 %v57, %v151
    %v290 = vmul.f32 %v58, %v155
    %v291 = vmul.f32 %v59, %v159
    %v292 = vmul.f32 %v60, %v163
    %v293 = vmul.f32 %v61, %v167
    %v294 = vmul.f32 %v62, %v171
    %v295 = vmul.f32 %v63, %v175
    %304 = vrot.lane.b32.xlu0 %v288, 16
    %v305 = vpop.permute.xlu0 %304
    %306 = vrot.lane.b32.xlu0 %v289, 16
    %v307 = vpop.permute.xlu0 %306
    %308 = vrot.lane.b32.xlu0 %v290, 16
    %v309 = vpop.permute.xlu0 %308
    %310 = vrot.lane.b32.xlu0 %v291, 16
    %v311 = vpop.permute.xlu0 %310
    %312 = vrot.lane.b32.xlu0 %v292, 16
    %v313 = vpop.permute.xlu0 %312
    %314 = vrot.lane.b32.xlu0 %v293, 16
    %v315 = vpop.permute.xlu0 %314
    %316 = vrot.lane.b32.xlu0 %v294, 16
    %v317 = vpop.permute.xlu0 %316
    %318 = vrot.lane.b32.xlu0 %v295, 16
    %v319 = vpop.permute.xlu0 %318
    %v328 = vadd.f32 %v280, %v305
    %v329 = vadd.f32 %v281, %v307
    %v330 = vadd.f32 %v282, %v309
    %v331 = vadd.f32 %v283, %v311
    %v332 = vadd.f32 %v284, %v313
    %v333 = vadd.f32 %v285, %v315
    %v334 = vadd.f32 %v286, %v317
    %v335 = vadd.f32 %v287, %v319
    %vm336 = vcmask 130048
    %v337 = vsel %vm336, %v248, %v328
    %v338 = vsel %vm336, %v249, %v329
    %v339 = vsel %vm336, %v250, %v330
    %v340 = vsel %vm336, %v251, %v331
    %v341 = vsel %vm336, %v252, %v332
    %v342 = vsel %vm336, %v253, %v333
    %v343 = vsel %vm336, %v254, %v334
    %v344 = vsel %vm336, %v255, %v335
    %vm345 = vcmask 261120
    %346 = vst.msk [vmem:[#allocation8] sm:$0xff] %vm345, %v337
    %347 = vst.msk [vmem:[#allocation8 + $0x8] sm:$0xff] %vm345, %v338
    %348 = vst.msk [vmem:[#allocation8 + $0x10] sm:$0xff] %vm345, %v339
    %349 = vst.msk [vmem:[#allocation8 + $0x18] sm:$0xff] %vm345, %v340
    %350 = vst.msk [vmem:[#allocation8 + $0x20] sm:$0xff] %vm345, %v341
    %351 = vst.msk [vmem:[#allocation8 + $0x28] sm:$0xff] %vm345, %v342
    %352 = vst.msk [vmem:[#allocation8 + $0x30] sm:$0xff] %vm345, %v343
    %353 = vst.msk [vmem:[#allocation8 + $0x38] sm:$0xff] %vm345, %v344
    // Predicated region
    $region26: #{tpu_custom_call.1} parent=1 // pred_check
      _
    $region27: #{tpu_custom_call.1} parent=1 // pred_check_branch
      %355 = sbr.rel (0) target = $region29
    $region28: #{tpu_custom_call.1} parent=1 // pred_region
      %s357 = ssub.s32 1024, 1024
      %358 = vsyncadd [#allocation4], %s357
      %s359 = sshll.u32 [#allocation8], 4
      %s360 = int_to_ptr.vmem [resolvable:$true] %s359
      %365 = dma.vmem_to_hbm [thread:$0]  %s360, 1024, %s3, [#allocation4], 128, 128, 8
    $region29: #{tpu_custom_call.1} parent=1 // pred_fallthru
      _
    // Predicated region
    $region30: #{tpu_custom_call.1} parent=1 // pred_check
      _
    $region31: #{tpu_custom_call.1} parent=1 // pred_check_branch
      %367 = sbr.rel (0) target = $region33
    $region32: #{tpu_custom_call.1} parent=1 // pred_region
      %368 = dma.done [#allocation4], 1024
    $region33: #{tpu_custom_call.1} parent=1 // pred_fallthru
      _
    %369 = vsyncpa [#allocation3], 1
    %370 = vsyncpa [#allocation6], 1
    %371 = vsyncpa [#allocation4], 1

</llo_original>
